<compile_context>
chip_gen: v6e
topology: v6e:2x2x1
jax: 0.10.0
libtpu: 0.0.40
codegen_flags: <defaults>
</compile_context>

<pallas_src>
import numpy as np
import jax
import jax.numpy as jnp
from jax import lax
from jax.experimental import pallas as pl
from jax.experimental.pallas import tpu as pltpu

C_PAD = 128  # lane-dense padded exemplar/cluster dimension


# ----------------------------------------------------------------------------
# Pallas kernels
# ----------------------------------------------------------------------------
def _encode_kernel(x_ref, w_ref, b_ref, o_ref):
    # Fused matmul + bias + tanh.  MXU takes bf16 operands with an f32 accumulator;
    # bias-add stays on the VPU and tanh goes to the EUP slot (idle during matmul).
    acc = jnp.dot(x_ref[...], w_ref[...], preferred_element_type=jnp.float32)
    o_ref[...] = jnp.tanh(acc + b_ref[...])


def pallas_encode(x_bf16, w_bf16, b_f32_row):
    """tanh(x @ w + b): [M, K] bf16 x [K, N] bf16 -> [M, N] f32, gridded over rows."""
    m, k = x_bf16.shape
    _, n = w_bf16.shape
    tm = 128 if (m % 128 == 0) else m
    return pl.pallas_call(
        _encode_kernel,
        out_shape=jax.ShapeDtypeStruct((m, n), jnp.float32),
        grid=(m // tm,),
        in_specs=[pl.BlockSpec((tm, k), lambda i: (i, 0)),
                  pl.BlockSpec((k, n), lambda i: (0, 0)),
                  pl.BlockSpec((1, n), lambda i: (0, 0))],
        out_specs=pl.BlockSpec((tm, n), lambda i: (i, 0)),
        compiler_params=pltpu.CompilerParams(
            dimension_semantics=("parallel",)),  # v7x: row tiles shard across both TCs
    )(x_bf16, w_bf16, b_f32_row)


def _matmul_kernel(a_ref, b_ref, o_ref):
    o_ref[...] = jnp.dot(a_ref[...], b_ref[...], preferred_element_type=jnp.float32)


def pallas_matmul(a, b):
    """Plain [M, K] @ [K, N] -> [M, N] f32 (small shapes, full-array block)."""
    m, k = a.shape
    _, n = b.shape
    return pl.pallas_call(
        _matmul_kernel,
        out_shape=jax.ShapeDtypeStruct((m, n), jnp.float32),
        in_specs=[pl.BlockSpec(memory_space=pltpu.MemorySpace.VMEM)] * 2,
        out_specs=pl.BlockSpec(memory_space=pltpu.MemorySpace.VMEM),
    )(a.astype(jnp.float32), b.astype(jnp.float32))


def _matmul_nt_kernel(a_ref, b_ref, o_ref):
    # a @ b.T contracted on the last dim inside the kernel -> no XLA-side transpose.
    o_ref[...] = lax.dot_general(a_ref[...], b_ref[...],
                                 (((1,), (1,)), ((), ())),
                                 preferred_element_type=jnp.float32)


def pallas_matmul_nt(a, b):
    """[M, K] @ [N, K].T -> [M, N] f32."""
    m, _ = a.shape
    n, _ = b.shape
    return pl.pallas_call(
        _matmul_nt_kernel,
        out_shape=jax.ShapeDtypeStruct((m, n), jnp.float32),
        in_specs=[pl.BlockSpec(memory_space=pltpu.MemorySpace.VMEM)] * 2,
        out_specs=pl.BlockSpec(memory_space=pltpu.MemorySpace.VMEM),
    )(a.astype(jnp.float32), b.astype(jnp.float32))


def _gather_concat_kernel(t_ref, start_ref, end_ref, out_ref):
    # Vectorized gather via one-hot @ activations on the MXU.
    #   t_ref:            [M, H]  flattened transformer output (M = num_mentions*seq)
    #   start_ref/end_ref:[N, 1]  int32 flat row indices
    #   out_ref:          [N, 2H] mention reps; two full [N, H] slab stores
    #                     (lane-dense, no per-row masked stores).
    m, h = t_ref.shape
    n = out_ref.shape[0]
    col = lax.broadcasted_iota(jnp.int32, (n, m), 1)
    t = t_ref[...]
    s_onehot = (col == start_ref[...]).astype(jnp.float32)
    e_onehot = (col == end_ref[...]).astype(jnp.float32)
    out_ref[:, 0:h] = jnp.dot(s_onehot, t, preferred_element_type=jnp.float32)
    out_ref[:, h:2 * h] = jnp.dot(e_onehot, t, preferred_element_type=jnp.float32)


def pallas_mention_gather(transformer_output, start_pieces, end_pieces):
    """torch.gather(start)/gather(end) + cat(dim=2) -> [N, 2H] mention reps."""
    n, s, h = transformer_output.shape
    t_flat = transformer_output.reshape(n * s, h).astype(jnp.float32)
    row = jnp.arange(n, dtype=jnp.int32)[:, None] * s
    # Clamp: OOB reads on a VMEM ref have no runtime bounds check.
    start_flat = jnp.clip(row + start_pieces.reshape(n, 1).astype(jnp.int32), 0, n * s - 1)
    end_flat = jnp.clip(row + end_pieces.reshape(n, 1).astype(jnp.int32), 0, n * s - 1)
    return pl.pallas_call(
        _gather_concat_kernel,
        out_shape=jax.ShapeDtypeStruct((n, 2 * h), jnp.float32),
        in_specs=[pl.BlockSpec(memory_space=pltpu.MemorySpace.VMEM)] * 3,
        out_specs=pl.BlockSpec(memory_space=pltpu.MemorySpace.VMEM),
    )(t_flat, start_flat, end_flat)


def _score_ce_kernel(reps_ref, ex_ref, lab_ref, nvalid_ref,
                     scores_ref, loss_ref, acc_ref):
    # Fused: scores = reps @ exemplars.T (lane-dense C_PAD columns), then
    # CrossEntropyLoss(reduction='sum') + accuracy with torch-argmax tie-breaking,
    # all from one VMEM-resident scores tile (no HBM round-trip of the scores).
    reps = reps_ref[...]                         # [N, 2H] f32
    ex = ex_ref[...]                             # [C_PAD, 2H] f32 (zero-padded rows)
    s = lax.dot_general(reps, ex, (((1,), (1,)), ((), ())),
                        preferred_element_type=jnp.float32)    # [N, C_PAD]
    scores_ref[...] = s                          # full-lane (128) store
    n, c_pad = s.shape
    col = lax.broadcasted_iota(jnp.int32, (n, c_pad), 1)
    nvalid = nvalid_ref[0]
    s_m = jnp.where(col < nvalid, s, jnp.float32(-1e30))       # mask padded clusters
    m = jnp.max(s_m, axis=-1, keepdims=True)
    lse = m + jnp.log(jnp.sum(jnp.exp(s_m - m), axis=-1, keepdims=True))
    labels = lab_ref[...]                        # [N, 1] int32
    tgt = jnp.sum(jnp.where(col == labels, s, 0.0), axis=-1, keepdims=True)
    loss_ref[0, 0] = jnp.sum(lse - tgt)
    # torch.argmax tie-break: lowest index among the maxima.
    pred = jnp.min(jnp.where(s_m == m, col, c_pad), axis=-1, keepdims=True)
    acc_ref[0, 0] = jnp.sum((pred == labels).astype(jnp.float32)) / jnp.float32(n)


def pallas_scores_ce_acc(mention_reps, exemplars_padded, local_labels, num_valid):
    n = mention_reps.shape[0]
    scores, loss, acc = pl.pallas_call(
        _score_ce_kernel,
        out_shape=(jax.ShapeDtypeStruct((n, C_PAD), jnp.float32),
                   jax.ShapeDtypeStruct((1, 1), jnp.float32),
                   jax.ShapeDtypeStruct((1, 1), jnp.float32)),
        in_specs=[pl.BlockSpec(memory_space=pltpu.MemorySpace.VMEM),
                  pl.BlockSpec(memory_space=pltpu.MemorySpace.VMEM),
                  pl.BlockSpec(memory_space=pltpu.MemorySpace.VMEM),
                  pl.BlockSpec(memory_space=pltpu.MemorySpace.SMEM)],
        out_specs=(pl.BlockSpec(memory_space=pltpu.MemorySpace.VMEM),
                   pl.BlockSpec(memory_space=pltpu.MemorySpace.SMEM),
                   pl.BlockSpec(memory_space=pltpu.MemorySpace.SMEM)),
    )(mention_reps.astype(jnp.float32),
      exemplars_padded.astype(jnp.float32),
      local_labels.reshape(n, 1).astype(jnp.int32),
      jnp.asarray([num_valid], dtype=jnp.int32))
    return scores, loss[0, 0], acc[0, 0]


# ----------------------------------------------------------------------------
# Model (mirrors EncoderCosineRanker)
# ----------------------------------------------------------------------------
class EncoderCosineRankerPallas:
    def __init__(self, key, vocab=64, seq=16, hidden=128, num_clusters=6):
        self.vocab, self.seq, self.hidden, self.num_clusters = vocab, seq, hidden, num_clusters
        k_emb, k_w, k_b = jax.random.split(key, 3)
        # TODO(synk): RobertaModel.from_pretrained('./models/roberta-large') cannot be
        # loaded here; replaced by a deterministic synthetic encoder with the same interface.
        self.embed_table = jax.random.normal(k_emb, (vocab, hidden), jnp.float32) * 0.02
        self.w_enc = jax.random.normal(k_w, (hidden, hidden), jnp.float32) / np.sqrt(hidden)
        self.b_enc = jax.random.normal(k_b, (hidden,), jnp.float32) * 0.01
        # Cast the weight once (bf16 MXU operands); keep bias in f32 for the VPU/EUP path.
        self.w_enc_bf16 = self.w_enc.astype(jnp.bfloat16)
        self.b_enc_row = self.b_enc.reshape(1, hidden).astype(jnp.float32)
        self.cluster_lookup = {}
        self.exemplar_table_padded = None   # faiss IndexFlatIP stand-in, zero-padded to C_PAD rows
        self.num_exemplars = 0

    def to_transformer_input(self, sentence_tokens):
        segment_idx = sentence_tokens * 0
        mask = sentence_tokens != 1
        return {"input_ids": sentence_tokens,
                "token_type_ids": segment_idx,
                "attention_mask": mask}

    def get_sentence_vecs(self, sentences):
        inputs = self.to_transformer_input(sentences)
        mask = inputs["attention_mask"].astype(jnp.float32)[..., None]
        emb = jnp.take(self.embed_table, inputs["input_ids"], axis=0) * mask
        n, s, h = emb.shape
        hidden = pallas_encode(emb.reshape(n * s, h).astype(jnp.bfloat16),
                               self.w_enc_bf16, self.b_enc_row)
        return hidden.reshape(n, s, h)

    def get_mention_rep(self, transformer_output, start_pieces, end_pieces):
        return pallas_mention_gather(transformer_output, start_pieces, end_pieces)

    def update_cluster_lookup(self, label_sets):
        # Batched: one encoder call + one gather call + one segment-mean matmul,
        # instead of 2 pallas calls per cluster.
        cids = sorted(label_sets)
        sents = jnp.concatenate([label_sets[c][0] for c in cids], axis=0)
        starts = jnp.concatenate([label_sets[c][1] for c in cids], axis=0)
        ends = jnp.concatenate([label_sets[c][2] for c in cids], axis=0)
        counts = [int(label_sets[c][0].shape[0]) for c in cids]

        t = self.get_sentence_vecs(sents)                       # [sum(counts), seq, H]
        reps = self.get_mention_rep(t, starts, ends)            # [sum(counts), 2H]

        total = int(reps.shape[0])
        seg = np.zeros((len(cids), total), dtype=np.float32)    # averaging matrix
        off = 0
        for r, c in enumerate(counts):
            seg[r, off:off + c] = 1.0 / c
            off += c
        means = pallas_matmul(jnp.asarray(seg), reps)           # [num_clusters, 2H]

        self.cluster_lookup = {cid: means[i:i + 1, :] for i, cid in enumerate(cids)}
        self.num_exemplars = len(cids)
        pad = jnp.zeros((C_PAD - len(cids), means.shape[1]), jnp.float32)
        self.exemplar_table_padded = jnp.concatenate([means, pad], axis=0)

    def convert_labels_to_reps(self, label):
        return self.cluster_lookup[label]

    def get_hard_cases(self, mention_reps):
        # TODO(synk): faiss.IndexFlatIP.search has no Pallas equivalent; emulated with a
        # Pallas inner-product matmul (contraction on the last dim, no XLA transpose)
        # + jax.lax.top_k over the valid exemplar columns.  Stays on device.
        sims = pallas_matmul_nt(mention_reps, self.exemplar_table_padded)  # [N, C_PAD]
        k = min(10, self.num_exemplars)
        _, idx = jax.lax.top_k(sims[:, :self.num_exemplars], k)
        return idx

    def forward(self, sentences, start_pieces, end_pieces, labels):
        transformer_output = self.get_sentence_vecs(sentences)
        mention_reps = self.get_mention_rep(transformer_output, start_pieces, end_pieces)
        hard_idx_dev = self.get_hard_cases(mention_reps)

        # TODO(synk): torch.unique(return_inverse=True) has a dynamic output shape, so the
        # de-dup must run on host; a single combined device->host transfer is used.
        labels_np, hard_idx = jax.device_get((labels, hard_idx_dev))
        labels_np = np.asarray(labels_np).reshape(-1, 1)
        hard_cases = np.asarray(hard_idx).reshape(-1, 1)
        labels_with_hard_neg = np.concatenate([labels_np, hard_cases], axis=0)
        unique_clusters, inverse = np.unique(labels_with_hard_neg.reshape(-1),
                                             return_inverse=True)
        local_labels = inverse[: labels_np.shape[0]].astype(np.int32)

        exemplars = jnp.concatenate(
            [self.convert_labels_to_reps(int(c)) for c in unique_clusters], axis=0)
        c = int(exemplars.shape[0])
        ex_padded = jnp.concatenate(
            [exemplars, jnp.zeros((C_PAD - c, exemplars.shape[1]), jnp.float32)], axis=0)

        # Fused scores matmul + cross-entropy + accuracy (single pallas_call).
        scores_padded, loss, acc = pallas_scores_ce_acc(
            mention_reps, ex_padded, jnp.asarray(local_labels, dtype=jnp.int32), c)
        return {"logits": scores_padded[:, :c], "loss": loss, "accuracy": acc}


if __name__ == "__main__":
    key = jax.random.PRNGKey(0)
    NUM_MENTIONS, SEQ, HIDDEN, VOCAB, NUM_CLUSTERS = 8, 16, 128, 64, 6
    model = EncoderCosineRankerPallas(key, vocab=VOCAB, seq=SEQ, hidden=HIDDEN,
                                      num_clusters=NUM_CLUSTERS)

    # Synthetic exemplar label_sets (update_cluster_lookup equivalent).
    label_sets = {}
    for cid in range(NUM_CLUSTERS):
        k1, k2, k3 = jax.random.split(jax.random.fold_in(key, cid + 1), 3)
        sents = jax.random.randint(k1, (4, SEQ), 2, VOCAB, dtype=jnp.int32)
        sents = sents.at[:, -2:].set(1)   # pad id 1 (RoBERTa convention)
        starts = jax.random.randint(k2, (4, 1), 0, SEQ - 4, dtype=jnp.int32)
        ends = jnp.minimum(
            starts + jax.random.randint(k3, (4, 1), 1, 3, dtype=jnp.int32), SEQ - 3)
        label_sets[cid] = (sents, starts, ends)
    model.update_cluster_lookup(label_sets)

    # Forward batch.
    kb = jax.random.fold_in(key, 1000)
    k1, k2, k3, k4 = jax.random.split(kb, 4)
    sentences = jax.random.randint(k1, (NUM_MENTIONS, SEQ), 2, VOCAB, dtype=jnp.int32)
    sentences = sentences.at[:, -3:].set(1)
    start_pieces = jax.random.randint(k2, (NUM_MENTIONS, 1), 0, SEQ - 5, dtype=jnp.int32)
    end_pieces = jnp.minimum(
        start_pieces + jax.random.randint(k3, (NUM_MENTIONS, 1), 1, 4, dtype=jnp.int32),
        SEQ - 4)
    labels = jax.random.randint(k4, (NUM_MENTIONS, 1), 0, NUM_CLUSTERS, dtype=jnp.int32)

    out = model.forward(sentences, start_pieces, end_pieces, labels)
    jax.block_until_ready((out["logits"], out["loss"], out["accuracy"]))
    print("KERNEL_OK")
</pallas_src>

<mosaic_0001>
module attributes {stable_mosaic.version = 11 : i64} {
  func.func @_encode_kernel(%arg0: i32, %arg1: memref<128x128xbf16, #tpu.memory_space<vmem>>, %arg2: memref<128x128xbf16, #tpu.memory_space<vmem>>, %arg3: memref<1x128xf32, #tpu.memory_space<vmem>>, %arg4: memref<128x128xf32, #tpu.memory_space<vmem>>) attributes {dimension_semantics = [#tpu.dimension_semantics<parallel>], iteration_bounds = array<i64: 3>, scalar_prefetch = 0 : i64, scratch_operands = 0 : i64, tpu.core_type = #tpu.core_type<tc>, window_params = [{transform_indices = @transform_0, window_bounds = array<i64: 128, 128>}, {pipeline_mode = #tpu.pipeline_mode<synchronous>, transform_indices = @transform_1, window_bounds = array<i64: 128, 128>}, {pipeline_mode = #tpu.pipeline_mode<synchronous>, transform_indices = @transform_2, window_bounds = array<i64: 1, 128>}, {transform_indices = @transform_3, window_bounds = array<i64: 128, 128>}]} {
    %c0 = arith.constant 0 : index
    %c0_0 = arith.constant 0 : index
    %0 = vector.load %arg1[%c0, %c0_0] : memref<128x128xbf16, #tpu.memory_space<vmem>>, vector<128x128xbf16>
    %c0_1 = arith.constant 0 : index
    %c0_2 = arith.constant 0 : index
    %1 = vector.load %arg2[%c0_1, %c0_2] : memref<128x128xbf16, #tpu.memory_space<vmem>>, vector<128x128xbf16>
    %cst = arith.constant dense<0.000000e+00> : vector<128x128xf32>
    %2 = tpu.matmul %0, %1, %cst {dimension_numbers = #tpu.dot_dimension_numbers<[1], [0], [0], [1], [0, 0, 1, 1], [], []>} : vector<128x128xbf16>, vector<128x128xbf16>, vector<128x128xf32> -> vector<128x128xf32>
    %c0_3 = arith.constant 0 : index
    %c0_4 = arith.constant 0 : index
    %3 = vector.load %arg3[%c0_3, %c0_4] : memref<1x128xf32, #tpu.memory_space<vmem>>, vector<1x128xf32>
    %4 = vector.broadcast %3 : vector<1x128xf32> to vector<128x128xf32>
    %5 = arith.addf %2, %4 : vector<128x128xf32>
    %6 = math.tanh %5 : vector<128x128xf32>
    %c0_5 = arith.constant 0 : index
    %c0_6 = arith.constant 0 : index
    %7 = vector.load %arg4[%c0_5, %c0_6] : memref<128x128xf32, #tpu.memory_space<vmem>>, vector<128x128xf32>
    tpu.vector_store %arg4[%c0_5, %c0_6], %6 {strides = array<i32>} : memref<128x128xf32, #tpu.memory_space<vmem>>, vector<128x128xf32>,
    return
  }
  func.func @transform_0(%arg0: i32) -> (i32, i32) {
    %c0_i32 = arith.constant 0 : i32
    %c0_i32_0 = arith.constant 0 : i32
    return %arg0, %c0_i32 : i32, i32
  }
  func.func @transform_1(%arg0: i32) -> (i32, i32) {
    %c0_i32 = arith.constant 0 : i32
    %c0_i32_0 = arith.constant 0 : i32
    %c0_i32_1 = arith.constant 0 : i32
    return %c0_i32, %c0_i32_0 : i32, i32
  }
  func.func @transform_2(%arg0: i32) -> (i32, i32) {
    %c0_i32 = arith.constant 0 : i32
    %c0_i32_0 = arith.constant 0 : i32
    %c0_i32_1 = arith.constant 0 : i32
    return %c0_i32, %c0_i32_0 : i32, i32
  }
  func.func @transform_3(%arg0: i32) -> (i32, i32) {
    %c0_i32 = arith.constant 0 : i32
    %c0_i32_0 = arith.constant 0 : i32
    return %arg0, %c0_i32 : i32, i32
  }
}

</mosaic_0001>

<llo_original>
// kernel: tpu_custom_call.1
$region0: #{tpu_custom_call.1}
  #allocation0 [shape = 'u32[]', space=smem, size = 0x4, offset = 0x4, fixed_abs, tag = 'smem constant byte address 0x4 - core index']
  #allocation1 [shape = 'u32[144,128]{1,0:T(1,128)}', space=vmem, size = 0x12000, scoped, tag = 'internal scratch']
  %s0 = inlined_call_operand.hbm [shape: bf16[384,128], index: 0, kind: input, shape index: {}]
  %s1 = inlined_call_operand.hbm [shape: bf16[128,128], index: 1, kind: input, shape index: {}]
  %s2 = inlined_call_operand.vmem [shape: f32[1,128], index: 2, kind: input, shape index: {}]
  %s3 = inlined_call_operand.hbm [shape: f32[384,128], index: 3, kind: output, shape index: {}]
  %s4 = sld [smem:[#allocation0]]
  $region53: #{tpu_custom_call.1} parent=0
    _
  %s6 = ssub.s32 1, %s4
  %s7 = scalar_select 0, %s6, %s4
  $region1: #{tpu_custom_call.1} parent=0
    #allocation2 [shape = 'u8[65536]{0}', space=vmem, size = 0x10000, scoped, tag = 'input window, operand 0']
    #allocation3 [shape = 's32[2]{0}', space=sflag, size = 0x8, scoped, tag = 'scoped memory for tpu_custom_call.1']
    #allocation4 [shape = 's32[2]{0}', space=sflag, size = 0x8, scoped, tag = 'scoped memory for tpu_custom_call.1']
    #allocation5 [shape = 'u8[32768]{0}', space=vmem, size = 0x8000, scoped, tag = 'input window, operand 1, single buffered']
    #allocation6 [shape = 's32[1]{0}', space=sflag, size = 0x4, scoped, tag = 'scoped memory for tpu_custom_call.1']
    #allocation7 [shape = 'u8[131072]{0}', space=vmem, size = 0x20000, scoped, tag = 'output window, operand 0']
    %8 = vsyncpa [#allocation3], 0
    %s9 = scalar_lea.sflag [#allocation3], 1
    %10 = vsyncpa %s9, 0
    %11 = vsyncpa [#allocation6], 0
    %12 = vsyncpa [#allocation4], 0
    %s13 = scalar_lea.sflag [#allocation4], 1
    %14 = vsyncpa %s13, 0
    loop: start=0, step=1, limit=5
    $region2: #{tpu_custom_call.1} parent=1 // loop_pre_header
      _
    $region3: #{tpu_custom_call.1} parent=1 // loop_header
      %s16 = sphi 0, %s20
      %p17 = scmp.ge.s32.totalorder %s16, 5
      %s26 = sphi 0, %s28
      %s29 = sphi 0, %s26
      %s30 = sphi 0, %s29
      %s46 = sphi 0, %s30
      %s50 = sphi 0, %s50
      %s52 = sphi 0, %s50
      %s53 = sphi 0, %s52
      %s67 = sphi 0, %s53
      %s71 = sphi 0, %s71
      %s73 = sphi 0, %s71
      %s74 = sphi 0, %s73
      %s88 = sphi 0, %s74
      %s94 = sphi 0, %s96
      %s97 = sphi 0, %s94
      %s98 = sphi 0, %s97
      %s114 = sphi 0, %s98
    $region4: #{tpu_custom_call.1} parent=1 // loop_header_branch
      %19 = sbr.rel (%p17) target = $region8
    $region5: #{tpu_custom_call.1} parent=1 // loop_body
      %s21 = ssub.s32 %s16, 1
      %s22 = ssub.s32 %s16, 2
      %s23 = sadd.s32 %s16, 1
      %s24 = ssub.s32 %s16, %s23
      %p25 = scmp.eq.s32.totalorder %s24, 0
      %s27 = sadd.s32 %s26, 1
      %s28 = scalar_select %p25, %s26, %s27
      %p31 = pneg %p25
      %p32 = scmp.eq.s32.totalorder %s16, 2
      %p33 = por %p31, %p32
      %p34 = scmp.ne.s32.totalorder %s26, %s29
      %p35 = scmp.eq.s32.totalorder %s16, 0
      %p36 = por %p34, %p35
      %p37 = scmp.ne.s32.totalorder %s26, %s29
      %p38 = scmp.eq.s32.totalorder %s21, 2
      %p39 = por %p37, %p38
      %p40 = scmp.ne.s32.totalorder %s29, %s30
      %p41 = scmp.eq.s32.totalorder %s21, 0
      %p42 = por %p40, %p41
      %p43 = scmp.ne.s32.totalorder %s29, %s30
      %p44 = scmp.eq.s32.totalorder %s22, 2
      %p45 = por %p43, %p44
      %p47 = scmp.ne.s32.totalorder %s30, %s46
      %p48 = scmp.eq.s32.totalorder %s22, 0
      %p49 = por %p47, %p48
      %s51 = sadd.s32 %s50, 1
      %p54 = scmp.eq.s32.totalorder %s16, 2
      %p55 = scmp.ne.s32.totalorder %s50, %s52
      %p56 = scmp.eq.s32.totalorder %s16, 0
      %p57 = por %p55, %p56
      %p58 = scmp.ne.s32.totalorder %s50, %s52
      %p59 = scmp.eq.s32.totalorder %s21, 2
      %p60 = por %p58, %p59
      %p61 = scmp.ne.s32.totalorder %s52, %s53
      %p62 = scmp.eq.s32.totalorder %s21, 0
      %p63 = por %p61, %p62
      %p64 = scmp.ne.s32.totalorder %s52, %s53
      %p65 = scmp.eq.s32.totalorder %s22, 2
      %p66 = por %p64, %p65
      %p68 = scmp.ne.s32.totalorder %s53, %s67
      %p69 = scmp.eq.s32.totalorder %s22, 0
      %p70 = por %p68, %p69
      %s72 = sadd.s32 %s71, 1
      %p75 = scmp.eq.s32.totalorder %s16, 2
      %p76 = scmp.ne.s32.totalorder %s71, %s73
      %p77 = scmp.eq.s32.totalorder %s16, 0
      %p78 = por %p76, %p77
      %p79 = scmp.ne.s32.totalorder %s71, %s73
      %p80 = scmp.eq.s32.totalorder %s21, 2
      %p81 = por %p79, %p80
      %p82 = scmp.ne.s32.totalorder %s73, %s74
      %p83 = scmp.eq.s32.totalorder %s21, 0
      %p84 = por %p82, %p83
      %p85 = scmp.ne.s32.totalorder %s73, %s74
      %p86 = scmp.eq.s32.totalorder %s22, 2
      %p87 = por %p85, %p86
      %p89 = scmp.ne.s32.totalorder %s74, %s88
      %p90 = scmp.eq.s32.totalorder %s22, 0
      %p91 = por %p89, %p90
      %s92 = ssub.s32 %s16, %s23
      %p93 = scmp.eq.s32.totalorder %s92, 0
      %s95 = sadd.s32 %s94, 1
      %s96 = scalar_select %p93, %s94, %s95
      %p99 = pneg %p93
      %p100 = scmp.eq.s32.totalorder %s16, 2
      %p101 = por %p99, %p100
      %p102 = scmp.ne.s32.totalorder %s94, %s97
      %p103 = scmp.eq.s32.totalorder %s16, 0
      %p104 = por %p102, %p103
      %p105 = scmp.ne.s32.totalorder %s94, %s97
      %p106 = scmp.eq.s32.totalorder %s21, 2
      %p107 = por %p105, %p106
      %p108 = scmp.ne.s32.totalorder %s97, %s98
      %p109 = scmp.eq.s32.totalorder %s21, 0
      %p110 = por %p108, %p109
      %p111 = scmp.ne.s32.totalorder %s97, %s98
      %p112 = scmp.eq.s32.totalorder %s22, 2
      %p113 = por %p111, %p112
      %p115 = scmp.ne.s32.totalorder %s98, %s114
      %p116 = scmp.eq.s32.totalorder %s22, 0
      %p117 = por %p115, %p116
      %p118 = scmp.le.s32.totalorder 1, %s16
      %p119 = scmp.lt.s32.totalorder %s16, 4
      %p120 = pnand %p118, %p119
      %p121 = pneg %p120
      // Predicated region
      $region9: #{tpu_custom_call.1} parent=5 // pred_check
        _
      $region10: #{tpu_custom_call.1} parent=5 // pred_check_branch
        %123 = sbr.rel (%p120) target = $region12
      $region11: #{tpu_custom_call.1} parent=5 // pred_region
        %s124 = ssub.s32 %s16, 1
        // Predicated region
        $region13: #{tpu_custom_call.1} parent=11 // pred_check
          %p125 = pneg %p63
        $region14: #{tpu_custom_call.1} parent=11 // pred_check_branch
          %127 = sbr.rel (%p125) target = $region16
        $region15: #{tpu_custom_call.1} parent=11 // pred_region
          %s129 = ssub.s32 1024, 1024
          %130 = vsyncadd [#allocation6], %s129
          %s131 = sshll.u32 [#allocation5], 4
          %s132 = int_to_ptr.vmem [resolvable:$true] %s131
          %137 = dma.hbm_to_vmem [thread:$0]  %s1, 1024, %s132, [#allocation6], 64, 64, 4
        $region16: #{tpu_custom_call.1} parent=11 // pred_fallthru
          _
        // Predicated region
        $region17: #{tpu_custom_call.1} parent=11 // pred_check
          %p138 = pneg %p84
        $region18: #{tpu_custom_call.1} parent=11 // pred_check_branch
          %140 = sbr.rel (%p138) target = $region20
        $region19: #{tpu_custom_call.1} parent=11 // pred_region
          _
        $region20: #{tpu_custom_call.1} parent=11 // pred_fallthru
          _
      $region12: #{tpu_custom_call.1} parent=5 // pred_fallthru
        _
      %p141 = scmp.lt.s32.totalorder %s16, 3
      // Predicated region
      $region21: #{tpu_custom_call.1} parent=5 // pred_check
        %p142 = pneg %p141
      $region22: #{tpu_custom_call.1} parent=5 // pred_check_branch
        %144 = sbr.rel (%p142) target = $region24
      $region23: #{tpu_custom_call.1} parent=5 // pred_region
        // Predicated region
        $region25: #{tpu_custom_call.1} parent=23 // pred_check
          %p145 = pneg %p36
        $region26: #{tpu_custom_call.1} parent=23 // pred_check_branch
          %147 = sbr.rel (%p145) target = $region28
        $region27: #{tpu_custom_call.1} parent=23 // pred_region
          %s148 = sand.u32 %s26, 1
          %s149 = scalar_lea.sflag [#allocation3], %s148
          %s150 = sand.u32 %s26, 1
          %s151 = smul.addr %s150, 64
          %s152 = scalar_lea.vmem [#allocation2], %s151
          %s153 = smul.u32 16, %s16
          %s155 = ssub.s32 1024, 1024
          %156 = vsyncadd %s149, %s155
          %s157 = smul.addr %s153, 64
          %s158 = scalar_lea.hbm %s0, %s157
          %s159 = sshll.u32 %s152, 4
          %s160 = int_to_ptr.vmem [resolvable:$true] %s159
          %165 = dma.hbm_to_vmem [thread:$0]  %s158, 1024, %s160, %s149, 64, 64, 4
        $region28: #{tpu_custom_call.1} parent=23 // pred_fallthru
          _
      $region24: #{tpu_custom_call.1} parent=5 // pred_fallthru
        _
      %p166 = scmp.le.s32.totalorder 1, %s16
      %p167 = scmp.lt.s32.totalorder %s16, 4
      %p168 = pnand %p166, %p167
      %p169 = pneg %p168
      // Predicated region
      $region29: #{tpu_custom_call.1} parent=5 // pred_check
        _
      $region30: #{tpu_custom_call.1} parent=5 // pred_check_branch
        %171 = sbr.rel (%p168) target = $region32
      $region31: #{tpu_custom_call.1} parent=5 // pred_region
        %s172 = ssub.s32 %s16, 1
        %s173 = sand.u32 %s29, 1
        %s174 = scalar_lea.sflag [#allocation3], %s173
        %s175 = sand.u32 %s29, 1
        %s176 = smul.addr %s175, 64
        %s177 = scalar_lea.vmem [#allocation2], %s176
        // Predicated region
        $region33: #{tpu_custom_call.1} parent=31 // pred_check
          %p178 = pneg %p42
        $region34: #{tpu_custom_call.1} parent=31 // pred_check_branch
          %180 = sbr.rel (%p178) target = $region36
        $region35: #{tpu_custom_call.1} parent=31 // pred_region
          %181 = dma.done %s174, 1024
        $region36: #{tpu_custom_call.1} parent=31 // pred_fallthru
          _
        // Predicated region
        $region37: #{tpu_custom_call.1} parent=31 // pred_check
          %p182 = pneg %p63
        $region38: #{tpu_custom_call.1} parent=31 // pred_check_branch
          %184 = sbr.rel (%p182) target = $region40
        $region39: #{tpu_custom_call.1} parent=31 // pred_region
          %185 = dma.done [#allocation6], 1024
        $region40: #{tpu_custom_call.1} parent=31 // pred_fallthru
          _
        %s186 = sand.u32 %s29, 1
        %s187 = scalar_lea.sflag [#allocation3], %s186
        %s188 = sand.u32 %s29, 1
        %s189 = smul.addr %s188, 64
        %s190 = scalar_lea.vmem [#allocation2], %s189
        %p191 = pneg %p42
        %p192 = pneg %p39
        %p193 = pneg %p63
        %p194 = pneg %p60
        %p195 = pneg %p84
        %p196 = pneg %p81
        %p197 = pneg %p110
        %p198 = pneg %p107
        %s199 = sand.u32 %s97, 1
        %s200 = scalar_lea.sflag [#allocation4], %s199
        %s201 = sand.u32 %s97, 1
        %s202 = smul.addr %s201, 128
        %s203 = scalar_lea.vmem [#allocation7], %s202
        %s204 = smul.u32 16, %s21
        %s205 = smul.u32 16, %s21
        %v207 = vld [vmem:[%s177] sm:$0xf]
        %v208 = vld [vmem:[%s177 + $0x4] sm:$0xf]
        %v209 = vld [vmem:[%s177 + $0x8] sm:$0xf]
        %v210 = vld [vmem:[%s177 + $0xc] sm:$0xf]
        %v211 = vld [vmem:[%s177 + $0x10] sm:$0xf]
        %v212 = vld [vmem:[%s177 + $0x14] sm:$0xf]
        %v213 = vld [vmem:[%s177 + $0x18] sm:$0xf]
        %v214 = vld [vmem:[%s177 + $0x1c] sm:$0xf]
        %v215 = vld [vmem:[%s177 + $0x20] sm:$0xf]
        %v216 = vld [vmem:[%s177 + $0x24] sm:$0xf]
        %v217 = vld [vmem:[%s177 + $0x28] sm:$0xf]
        %v218 = vld [vmem:[%s177 + $0x2c] sm:$0xf]
        %v219 = vld [vmem:[%s177 + $0x30] sm:$0xf]
        %v220 = vld [vmem:[%s177 + $0x34] sm:$0xf]
        %v221 = vld [vmem:[%s177 + $0x38] sm:$0xf]
        %v222 = vld [vmem:[%s177 + $0x3c] sm:$0xf]
        %v223 = vld [vmem:[#allocation5] sm:$0xf]
        %v224 = vld [vmem:[#allocation5 + $0x4] sm:$0xf]
        %v225 = vld [vmem:[#allocation5 + $0x8] sm:$0xf]
        %v226 = vld [vmem:[#allocation5 + $0xc] sm:$0xf]
        %v227 = vld [vmem:[#allocation5 + $0x10] sm:$0xf]
        %v228 = vld [vmem:[#allocation5 + $0x14] sm:$0xf]
        %v229 = vld [vmem:[#allocation5 + $0x18] sm:$0xf]
        %v230 = vld [vmem:[#allocation5 + $0x1c] sm:$0xf]
        %v231 = vld [vmem:[#allocation5 + $0x20] sm:$0xf]
        %v232 = vld [vmem:[#allocation5 + $0x24] sm:$0xf]
        %v233 = vld [vmem:[#allocation5 + $0x28] sm:$0xf]
        %v234 = vld [vmem:[#allocation5 + $0x2c] sm:$0xf]
        %v235 = vld [vmem:[#allocation5 + $0x30] sm:$0xf]
        %v236 = vld [vmem:[#allocation5 + $0x34] sm:$0xf]
        %v237 = vld [vmem:[#allocation5 + $0x38] sm:$0xf]
        %v238 = vld [vmem:[#allocation5 + $0x3c] sm:$0xf]
        %v239 = vld [vmem:[%s2] sm:$0x1]
        %v241 = vlaneseq
        %v242 = vshrl.u32 %v241, 7
        %v243 = vsub.s32 0, %v242
        %v244 = vrot.slane %v239, %v243
        %v262 = vunpack.c.l.b16 %v207
        %v263 = vunpack.c.l.b16 %v208
        %v264 = vunpack.c.l.b16 %v209
        %v265 = vunpack.c.l.b16 %v210
        %v266 = vunpack.c.l.b16 %v211
        %v267 = vunpack.c.l.b16 %v212
        %v268 = vunpack.c.l.b16 %v213
        %v269 = vunpack.c.l.b16 %v214
        %v270 = vunpack.c.l.b16 %v215
        %v271 = vunpack.c.l.b16 %v216
        %v272 = vunpack.c.l.b16 %v217
        %v273 = vunpack.c.l.b16 %v218
        %v274 = vunpack.c.l.b16 %v219
        %v275 = vunpack.c.l.b16 %v220
        %v276 = vunpack.c.l.b16 %v221
        %v277 = vunpack.c.l.b16 %v222
        %v278 = vpack.c.b16 %v263, %v262
        %v279 = vpack.c.b16 %v265, %v264
        %v280 = vpack.c.b16 %v267, %v266
        %v281 = vpack.c.b16 %v269, %v268
        %v282 = vpack.c.b16 %v271, %v270
        %v283 = vpack.c.b16 %v273, %v272
        %v284 = vpack.c.b16 %v275, %v274
        %v285 = vpack.c.b16 %v277, %v276
        %v310 = vunpack.c.l.b16 %v223
        %v311 = vunpack.c.l.b16 %v224
        %v312 = vunpack.c.l.b16 %v225
        %v313 = vunpack.c.l.b16 %v226
        %v314 = vunpack.c.l.b16 %v227
        %v315 = vunpack.c.l.b16 %v228
        %v316 = vunpack.c.l.b16 %v229
        %v317 = vunpack.c.l.b16 %v230
        %v318 = vunpack.c.l.b16 %v231
        %v319 = vunpack.c.l.b16 %v232
        %v320 = vunpack.c.l.b16 %v233
        %v321 = vunpack.c.l.b16 %v234
        %v322 = vunpack.c.l.b16 %v235
        %v323 = vunpack.c.l.b16 %v236
        %v324 = vunpack.c.l.b16 %v237
        %v325 = vunpack.c.l.b16 %v238
        %v326 = vpack.c.b16 %v311, %v310
        %v327 = vpack.c.b16 %v313, %v312
        %v328 = vpack.c.b16 %v315, %v314
        %v329 = vpack.c.b16 %v317, %v316
        %v330 = vpack.c.b16 %v319, %v318
        %v331 = vpack.c.b16 %v321, %v320
        %v332 = vpack.c.b16 %v323, %v322
        %v333 = vpack.c.b16 %v325, %v324
        %342 = vmatprep.subr.bf16.mxu0 0
        %343 = vmatpush1.bf16.msra.mxu0 %v333
        %344 = vmatprep.subr.bf16.mxu0 0
        %345 = vmatpush1.bf16.msra.mxu0 %v332
        %346 = vmatprep.subr.bf16.mxu0 0
        %347 = vmatpush1.bf16.msra.mxu0 %v331
        %348 = vmatprep.subr.bf16.mxu0 0
        %349 = vmatpush1.bf16.msra.mxu0 %v330
        %350 = vmatprep.subr.bf16.mxu0 0
        %351 = vmatpush1.bf16.msra.mxu0 %v329
        %352 = vmatprep.subr.bf16.mxu0 0
        %353 = vmatpush1.bf16.msra.mxu0 %v328
        %354 = vmatprep.subr.bf16.mxu0 0
        %355 = vmatpush1.bf16.msra.mxu0 %v327
        %356 = vmatprep.subr.bf16.mxu0 0
        %357 = vmatpush1.bf16.msra.mxu0 %v326
        %358 = vmatprep.subr.bf16.mxu0 0
        %359 = vmatpush2.bf16.msra.mxu0 0
        %360 = vmatprep.subr.bf16.mxu0 0
        %361 = vmatpush2.bf16.msra.mxu0 0
        %362 = vmatprep.subr.bf16.mxu0 0
        %363 = vmatpush2.bf16.msra.mxu0 0
        %364 = vmatprep.subr.bf16.mxu0 0
        %365 = vmatpush2.bf16.msra.mxu0 0
        %366 = vmatprep.subr.bf16.mxu0 0
        %367 = vmatpush2.bf16.msra.mxu0 0
        %368 = vmatprep.subr.bf16.mxu0 0
        %369 = vmatpush2.bf16.msra.mxu0 0
        %370 = vmatprep.subr.bf16.mxu0 0
        %371 = vmatpush2.bf16.msra.mxu0 0
        %372 = vmatprep.subr.bf16.mxu0 0
        %373 = vmatpush2.bf16.msra.mxu0 0
        %374 = vmatprep.mubr.bf16.mxu0 0
        %375 = vmatmul.mubr.bf16.gmra.mxu0 %v278
        %v376 = vpop.f32.mrf.mxu0
        %v377 = vadd.f32 %v244, %v376
        %v378 = vpop.f32.mrf.mxu0
        %v379 = vpop.f32.mrf.mxu0
        %v380 = vadd.f32 %v244, %v379
        %v381 = vpop.f32.mrf.mxu0
        %382 = vmatprep.mubr.bf16.mxu0 0
        %383 = vmatmul.mubr.bf16.gmra.mxu0 %v279
        %v384 = vpop.f32.mrf.mxu0
        %v385 = vadd.f32 %v244, %v384
        %v386 = vpop.f32.mrf.mxu0
        %v387 = vpop.f32.mrf.mxu0
        %v388 = vadd.f32 %v244, %v387
        %v389 = vpop.f32.mrf.mxu0
        %390 = vmatprep.mubr.bf16.mxu0 0
        %391 = vmatmul.mubr.bf16.gmra.mxu0 %v280
        %v392 = vpop.f32.mrf.mxu0
        %v393 = vadd.f32 %v244, %v392
        %v394 = vpop.f32.mrf.mxu0
        %v395 = vpop.f32.mrf.mxu0
        %v396 = vadd.f32 %v244, %v395
        %v397 = vpop.f32.mrf.mxu0
        %398 = vmatprep.mubr.bf16.mxu0 0
        %399 = vmatmul.mubr.bf16.gmra.mxu0 %v281
        %v400 = vpop.f32.mrf.mxu0
        %v401 = vadd.f32 %v244, %v400
        %v402 = vpop.f32.mrf.mxu0
        %v403 = vpop.f32.mrf.mxu0
        %v404 = vadd.f32 %v244, %v403
        %v405 = vpop.f32.mrf.mxu0
        %406 = vmatprep.mubr.bf16.mxu0 0
        %407 = vmatmul.mubr.bf16.gmra.mxu0 %v282
        %v408 = vpop.f32.mrf.mxu0
        %v409 = vadd.f32 %v244, %v408
        %v410 = vpop.f32.mrf.mxu0
        %v411 = vpop.f32.mrf.mxu0
        %v412 = vadd.f32 %v244, %v411
        %v413 = vpop.f32.mrf.mxu0
        %414 = vmatprep.mubr.bf16.mxu0 0
        %415 = vmatmul.mubr.bf16.gmra.mxu0 %v283
        %v416 = vpop.f32.mrf.mxu0
        %v417 = vadd.f32 %v244, %v416
        %v418 = vpop.f32.mrf.mxu0
        %v419 = vpop.f32.mrf.mxu0
        %v420 = vadd.f32 %v244, %v419
        %v421 = vpop.f32.mrf.mxu0
        %422 = vmatprep.mubr.bf16.mxu0 0
        %423 = vmatmul.mubr.bf16.gmra.mxu0 %v284
        %v424 = vpop.f32.mrf.mxu0
        %v425 = vadd.f32 %v244, %v424
        %v426 = vpop.f32.mrf.mxu0
        %v427 = vpop.f32.mrf.mxu0
        %v428 = vadd.f32 %v244, %v427
        %v429 = vpop.f32.mrf.mxu0
        %430 = vmatprep.mubr.bf16.mxu0 0
        %431 = vmatmul.mubr.bf16.gmra.mxu0 %v285
        %v432 = vpop.f32.mrf.mxu0
        %v433 = vadd.f32 %v244, %v432
        %v434 = vpop.f32.mrf.mxu0
        %v435 = vpop.f32.mrf.mxu0
        %v436 = vadd.f32 %v244, %v435
        %v437 = vpop.f32.mrf.mxu0
        %438 = vdwg.mxu0
        %v439 = vtanh.pop %v377
        %v440 = vtanh.pop %v380
        %v441 = vtanh.pop %v385
        %v442 = vtanh.pop %v388
        %v443 = vtanh.pop %v393
        %v444 = vtanh.pop %v396
        %v445 = vtanh.pop %v401
        %v446 = vtanh.pop %v404
        %v447 = vtanh.pop %v409
        %v448 = vtanh.pop %v412
        %v449 = vtanh.pop %v417
        %v450 = vtanh.pop %v420
        %v451 = vtanh.pop %v425
        %v452 = vtanh.pop %v428
        %v453 = vtanh.pop %v433
        %v454 = vtanh.pop %v436
        %455 = vst [vmem:[%s203] sm:$0xff] %v439
        %456 = vst [vmem:[%s203 + $0x8] sm:$0xff] %v440
        %457 = vst [vmem:[%s203 + $0x10] sm:$0xff] %v441
        %458 = vst [vmem:[%s203 + $0x18] sm:$0xff] %v442
        %459 = vst [vmem:[%s203 + $0x20] sm:$0xff] %v443
        %460 = vst [vmem:[%s203 + $0x28] sm:$0xff] %v444
        %461 = vst [vmem:[%s203 + $0x30] sm:$0xff] %v445
        %462 = vst [vmem:[%s203 + $0x38] sm:$0xff] %v446
        %463 = vst [vmem:[%s203 + $0x40] sm:$0xff] %v447
        %464 = vst [vmem:[%s203 + $0x48] sm:$0xff] %v448
        %465 = vst [vmem:[%s203 + $0x50] sm:$0xff] %v449
        %466 = vst [vmem:[%s203 + $0x58] sm:$0xff] %v450
        %467 = vst [vmem:[%s203 + $0x60] sm:$0xff] %v451
        %468 = vst [vmem:[%s203 + $0x68] sm:$0xff] %v452
        %469 = vst [vmem:[%s203 + $0x70] sm:$0xff] %v453
        %470 = vst [vmem:[%s203 + $0x78] sm:$0xff] %v454
        %s471 = sand.u32 %s97, 1
        %s472 = scalar_lea.sflag [#allocation4], %s471
        %s473 = sand.u32 %s97, 1
        %s474 = smul.addr %s473, 128
        %s475 = scalar_lea.vmem [#allocation7], %s474
        // Predicated region
        $region41: #{tpu_custom_call.1} parent=31 // pred_check
          %p476 = pneg %p107
        $region42: #{tpu_custom_call.1} parent=31 // pred_check_branch
          %478 = sbr.rel (%p476) target = $region44
        $region43: #{tpu_custom_call.1} parent=31 // pred_region
          %s479 = smul.u32 16, %s21
          %s481 = ssub.s32 2048, 2048
          %482 = vsyncadd %s472, %s481
          %s483 = smul.addr %s479, 128
          %s484 = scalar_lea.hbm %s3, %s483
          %s485 = sshll.u32 %s475, 4
          %s486 = int_to_ptr.vmem [resolvable:$true] %s485
          %491 = dma.vmem_to_hbm [thread:$0]  %s486, 2048, %s484, %s472, 128, 128, 8
        $region44: #{tpu_custom_call.1} parent=31 // pred_fallthru
          _
      $region32: #{tpu_custom_call.1} parent=5 // pred_fallthru
        _
      %p492 = scmp.le.s32.totalorder 2, %s16
      // Predicated region
      $region45: #{tpu_custom_call.1} parent=5 // pred_check
        %p493 = pneg %p492
      $region46: #{tpu_custom_call.1} parent=5 // pred_check_branch
        %495 = sbr.rel (%p493) target = $region48
      $region47: #{tpu_custom_call.1} parent=5 // pred_region
        %s496 = ssub.s32 %s16, 2
        // Predicated region
        $region49: #{tpu_custom_call.1} parent=47 // pred_check
          %p497 = pneg %p113
        $region50: #{tpu_custom_call.1} parent=47 // pred_check_branch
          %499 = sbr.rel (%p497) target = $region52
        $region51: #{tpu_custom_call.1} parent=47 // pred_region
          %s500 = sand.u32 %s98, 1
          %s501 = scalar_lea.sflag [#allocation4], %s500
          %s502 = sand.u32 %s98, 1
          %s503 = smul.addr %s502, 128
          %s504 = scalar_lea.vmem [#allocation7], %s503
          %505 = dma.done %s501, 2048
        $region52: #{tpu_custom_call.1} parent=47 // pred_fallthru
          _
      $region48: #{tpu_custom_call.1} parent=5 // pred_fallthru
        _
    $region6: #{tpu_custom_call.1} parent=1 // loop_footer
      %s20 = sadd.s32 1, %s16
    $region7: #{tpu_custom_call.1} parent=1 // loop_footer_branch
      %15 = sbr.rel target = $region3
    $region8: #{tpu_custom_call.1} parent=1 // loop_exit
      _
    %506 = vsyncpa [#allocation3], 1
    %s507 = scalar_lea.sflag [#allocation3], 1
    %508 = vsyncpa %s507, 1
    %509 = vsyncpa [#allocation6], 1
    %510 = vsyncpa [#allocation4], 1
    %s511 = scalar_lea.sflag [#allocation4], 1
    %512 = vsyncpa %s511, 1

</llo_original>
